<compile_context>
chip_gen: v7x
topology: tpu7x:2x2x1
jax: 0.10.0
libtpu: 0.0.40
codegen_flags: <defaults>
</compile_context>

<pallas_src>
from typing import NamedTuple

import jax
import jax.numpy as jnp
from jax.experimental import pallas as pl
from jax.experimental.pallas import tpu as pltpu

LANE = 128                              # lane width / MXU-friendly feature padding
MAX_BATCH_TILE = 1024                   # big tiles amortize ~0.35us/step (v5e/v6e friendly)
SPLIT_MIN_BATCH = 256                   # above this, force >=2 grid steps (v7x megacore)
VMEM_RESIDENCY_BUDGET = 48 * 1024 * 1024  # v7x-safe (64 MiB physical per TensorCore)


def _round_up(n, m):
    return ((n + m - 1) // m) * m


class QNetParams(NamedTuple):
    w1: jax.Array   # [IN_P, HID_P]  (b1 folded into row in_f; 1.0 at [in_f, hid])
    w2: jax.Array   # [HID_P, OUT_P] (b2 folded into row hid)
    in_f: int
    hid: int
    out_f: int


def prepare_params(w1, b1, w2, b2, use_bf16=True):
    """One-time (outside the hot path) pad + bias-fuse + cast of the weights.

    Bias folding: x carries a padded column that is always 1.0, so
      w1_aug[in_f, :hid]  = b1      -> layer-1 bias comes out of the first matmul
      w1_aug[in_f,  hid]  = 1.0     -> h[:, hid] == relu(1) == 1 for every real row
      w2_aug[hid,  :out_f] = b2     -> layer-2 bias comes out of the second matmul
    Zero padding everywhere else keeps the numerics exact.
    """
    in_f, hid = w1.shape
    hid2, out_f = w2.shape
    assert hid2 == hid, "w2 must be [hidden, out]"

    IN_P = _round_up(in_f + 1, LANE)    # +1: room for the ones column of x
    HID_P = _round_up(hid + 1, LANE)    # +1: room for the layer-2 bias row
    OUT_P = _round_up(out_f, LANE)
    dtype = jnp.bfloat16 if use_bf16 else jnp.float32

    w1_aug = jnp.zeros((IN_P, HID_P), jnp.float32)
    w1_aug = w1_aug.at[:in_f, :hid].set(w1.astype(jnp.float32))
    w1_aug = w1_aug.at[in_f, :hid].set(b1.reshape(-1).astype(jnp.float32))
    w1_aug = w1_aug.at[in_f, hid].set(1.0)

    w2_aug = jnp.zeros((HID_P, OUT_P), jnp.float32)
    w2_aug = w2_aug.at[:hid, :out_f].set(w2.astype(jnp.float32))
    w2_aug = w2_aug.at[hid, :out_f].set(b2.reshape(-1).astype(jnp.float32))

    return QNetParams(w1=w1_aug.astype(dtype), w2=w2_aug.astype(dtype),
                      in_f=in_f, hid=hid, out_f=out_f)


def _qnet_kernel(x_ref, w1_ref, w2_ref, o_ref):
    # Layer 1 (+ fused b1 via the ones column of x): MXU matmul, f32 accumulation.
    h = jnp.dot(x_ref[...], w1_ref[...], preferred_element_type=jnp.float32)
    # ReLU in f32 on the VPU; the fused hid-bias column comes out as relu(1) == 1.
    h = jnp.maximum(h, 0.0)
    # Layer 2 (+ fused b2 via that hid-bias column of h).
    o = jnp.dot(h.astype(w2_ref.dtype), w2_ref[...], preferred_element_type=jnp.float32)
    o_ref[...] = o.astype(o_ref.dtype)


def linear_qnet_forward(x, w1_aug, w2_aug, out_f):
    """Fused 2-layer MLP forward using pre-prepared (padded, bias-fused) weights."""
    B, in_f = x.shape
    IN_P, HID_P = w1_aug.shape
    HID_P2, OUT_P = w2_aug.shape
    assert HID_P2 == HID_P and IN_P >= in_f + 1

    dtype = jnp.dtype(w1_aug.dtype)
    is_bf16 = dtype == jnp.dtype(jnp.bfloat16)
    out_dtype = jnp.bfloat16 if is_bf16 else jnp.float32
    pack = 16 if is_bf16 else 8          # sublane pack: bf16 vreg is [16,128]

    # Batch tile: whole (pack-aligned) batch for small B; for larger B split into
    # >=2 grid steps (megacore sharding + DMA/compute overlap), capped at 1024 rows.
    if B > SPLIT_MIN_BATCH:
        TB = min(MAX_BATCH_TILE, _round_up(pl.cdiv(B, 2), pack))
    else:
        TB = _round_up(B, pack)
    B_P = _round_up(B, TB)
    grid = (B_P // TB,)

    # Per-call x prep only: append the ones column (fused biases), zero-pad, cast.
    ones_col = jnp.ones((B, 1), x.dtype)
    x_aug = jnp.concatenate([x, ones_col], axis=1)
    x_p = jnp.pad(x_aug, ((0, B_P - B), (0, IN_P - in_f - 1))).astype(dtype)

    itm = dtype.itemsize
    out_itm = jnp.dtype(out_dtype).itemsize
    w_bytes = (w1_aug.size + w2_aug.size) * itm
    tile_bytes = TB * (IN_P * itm + OUT_P * out_itm)
    footprint = w_bytes + 2 * tile_bytes          # resident weights + double-buffered x/out
    if footprint > VMEM_RESIDENCY_BUDGET:
        # TODO(synk): fall back to a hidden-dim (K) tiled grid ("arbitrary" reduction axis)
        # when the weights no longer fit VMEM-resident on v7x.
        raise ValueError(
            f"QNet weights + tiles ({footprint} B) exceed the VMEM residency budget "
            f"({VMEM_RESIDENCY_BUDGET} B)")
    vmem_limit = min(VMEM_RESIDENCY_BUDGET, _round_up(footprint + (2 << 20), 1 << 20))

    cost = pl.CostEstimate(
        flops=2 * B_P * (IN_P * HID_P + HID_P * OUT_P),
        transcendentals=0,
        bytes_accessed=x_p.size * itm + w_bytes + B_P * OUT_P * out_itm,
    )

    vmem = pltpu.MemorySpace.VMEM
    out_p = pl.pallas_call(
        _qnet_kernel,
        out_shape=jax.ShapeDtypeStruct((B_P, OUT_P), out_dtype),
        grid=grid,
        in_specs=[
            pl.BlockSpec((TB, IN_P), lambda i: (i, 0), memory_space=vmem),
            pl.BlockSpec((IN_P, HID_P), lambda i: (0, 0), memory_space=vmem),  # resident
            pl.BlockSpec((HID_P, OUT_P), lambda i: (0, 0), memory_space=vmem),  # resident
        ],
        out_specs=pl.BlockSpec((TB, OUT_P), lambda i: (i, 0), memory_space=vmem),
        compiler_params=pltpu.CompilerParams(
            dimension_semantics=("parallel",),
            vmem_limit_bytes=vmem_limit,
        ),
        cost_estimate=cost,
    )(x_p, w1_aug, w2_aug)

    return out_p[:B, :out_f]


def init_params(key, input_size, hidden_size, output_size):
    """Deterministic init mimicking torch.nn.Linear (U[-1/sqrt(fan_in), 1/sqrt(fan_in)])."""
    k1, k2, k3, k4 = jax.random.split(key, 4)
    bound1 = 1.0 / (input_size ** 0.5)
    bound2 = 1.0 / (hidden_size ** 0.5)
    w1 = jax.random.uniform(k1, (input_size, hidden_size), jnp.float32, -bound1, bound1)
    b1 = jax.random.uniform(k2, (1, hidden_size), jnp.float32, -bound1, bound1)
    w2 = jax.random.uniform(k3, (hidden_size, output_size), jnp.float32, -bound2, bound2)
    b2 = jax.random.uniform(k4, (1, output_size), jnp.float32, -bound2, bound2)
    return w1, b1, w2, b2


# TODO(synk): PyTorch save()/load() (checkpoint I/O) is host-side and has no Pallas equivalent.

if __name__ == "__main__":
    # Small shapes consistent with the module's forward (e.g. a snake-game Q-net).
    batch, input_size, hidden_size, output_size = 8, 16, 32, 8

    key = jax.random.PRNGKey(0)
    kx, kp, kx2 = jax.random.split(key, 3)
    x = jax.random.normal(kx, (batch, input_size), jnp.float32)
    w1, b1, w2, b2 = init_params(kp, input_size, hidden_size, output_size)

    fwd = jax.jit(linear_qnet_forward, static_argnames=("out_f",))

    # --- bf16 MXU fast path (bf16 inputs/output, f32 accumulation) ---
    p16 = prepare_params(w1, b1, w2, b2, use_bf16=True)
    out = jax.block_until_ready(fwd(x, p16.w1, p16.w2, out_f=p16.out_f))

    def r(a):  # reference with matching bf16 input rounding, f32 accumulation
        return a.astype(jnp.bfloat16).astype(jnp.float32)

    h_ref = jnp.maximum(r(x) @ r(w1) + r(b1), 0.0)
    ref = r(h_ref) @ r(w2) + r(b2)
    assert out.shape == (batch, output_size)
    assert out.dtype == jnp.bfloat16
    err = jnp.max(jnp.abs(out.astype(jnp.float32) - ref))
    assert err < 3e-2, f"bf16 path max abs err = {err}"

    # --- all-f32 path (PyTorch training-parity) ---
    p32 = prepare_params(w1, b1, w2, b2, use_bf16=False)
    out_f32 = jax.block_until_ready(fwd(x, p32.w1, p32.w2, out_f=p32.out_f))
    ref_f32 = jnp.maximum(x @ w1 + b1, 0.0) @ w2 + b2
    assert out_f32.dtype == jnp.float32
    assert jnp.allclose(out_f32, ref_f32, atol=1e-5, rtol=1e-5), (
        f"f32 path max abs err = {jnp.max(jnp.abs(out_f32 - ref_f32))}"
    )

    # --- larger ragged batch exercising the multi-step grid + batch padding ---
    xb = jax.random.normal(kx2, (300, input_size), jnp.float32)
    out_b = jax.block_until_ready(fwd(xb, p32.w1, p32.w2, out_f=p32.out_f))
    ref_b = jnp.maximum(xb @ w1 + b1, 0.0) @ w2 + b2
    assert out_b.shape == (300, output_size)
    assert jnp.allclose(out_b, ref_b, atol=1e-5, rtol=1e-5)

    print("KERNEL_OK")
</pallas_src>

<mosaic_0001>
module attributes {stable_mosaic.version = 11 : i64} {
  func.func @_qnet_kernel(%arg0: i32, %arg1: memref<16x128xbf16, #tpu.memory_space<vmem>>, %arg2: memref<128x128xbf16, #tpu.memory_space<vmem>>, %arg3: memref<128x128xbf16, #tpu.memory_space<vmem>>, %arg4: memref<16x128xbf16, #tpu.memory_space<vmem>>) attributes {dimension_semantics = [#tpu.dimension_semantics<parallel>], iteration_bounds = array<i64: 1>, scalar_prefetch = 0 : i64, scratch_operands = 0 : i64, tpu.core_type = #tpu.core_type<tc>, window_params = [{transform_indices = @transform_0, window_bounds = array<i64: 16, 128>}, {pipeline_mode = #tpu.pipeline_mode<synchronous>, transform_indices = @transform_1, window_bounds = array<i64: 128, 128>}, {pipeline_mode = #tpu.pipeline_mode<synchronous>, transform_indices = @transform_2, window_bounds = array<i64: 128, 128>}, {transform_indices = @transform_3, window_bounds = array<i64: 16, 128>}]} {
    %c0 = arith.constant 0 : index
    %c0_0 = arith.constant 0 : index
    %0 = vector.load %arg1[%c0, %c0_0] : memref<16x128xbf16, #tpu.memory_space<vmem>>, vector<16x128xbf16>
    %c0_1 = arith.constant 0 : index
    %c0_2 = arith.constant 0 : index
    %1 = vector.load %arg2[%c0_1, %c0_2] : memref<128x128xbf16, #tpu.memory_space<vmem>>, vector<128x128xbf16>
    %cst = arith.constant dense<0.000000e+00> : vector<16x128xf32>
    %2 = tpu.matmul %0, %1, %cst {dimension_numbers = #tpu.dot_dimension_numbers<[1], [0], [0], [1], [0, 0, 1, 1], [], []>} : vector<16x128xbf16>, vector<128x128xbf16>, vector<16x128xf32> -> vector<16x128xf32>
    %cst_3 = arith.constant 0.000000e+00 : f32
    %3 = vector.broadcast %cst_3 : f32 to vector<16x128xf32>
    %4 = arith.maximumf %2, %3 : vector<16x128xf32>
    %5 = arith.truncf %4 : vector<16x128xf32> to vector<16x128xbf16>
    %c0_4 = arith.constant 0 : index
    %c0_5 = arith.constant 0 : index
    %6 = vector.load %arg3[%c0_4, %c0_5] : memref<128x128xbf16, #tpu.memory_space<vmem>>, vector<128x128xbf16>
    %cst_6 = arith.constant dense<0.000000e+00> : vector<16x128xf32>
    %7 = tpu.matmul %5, %6, %cst_6 {dimension_numbers = #tpu.dot_dimension_numbers<[1], [0], [0], [1], [0, 0, 1, 1], [], []>} : vector<16x128xbf16>, vector<128x128xbf16>, vector<16x128xf32> -> vector<16x128xf32>
    %8 = arith.truncf %7 : vector<16x128xf32> to vector<16x128xbf16>
    %c0_7 = arith.constant 0 : index
    %c0_8 = arith.constant 0 : index
    %9 = vector.load %arg4[%c0_7, %c0_8] : memref<16x128xbf16, #tpu.memory_space<vmem>>, vector<16x128xbf16>
    tpu.vector_store %arg4[%c0_7, %c0_8], %8 {strides = array<i32>} : memref<16x128xbf16, #tpu.memory_space<vmem>>, vector<16x128xbf16>,
    return
  }
  func.func @transform_0(%arg0: i32) -> (i32, i32) {
    %c0_i32 = arith.constant 0 : i32
    %c0_i32_0 = arith.constant 0 : i32
    return %arg0, %c0_i32 : i32, i32
  }
  func.func @transform_1(%arg0: i32) -> (i32, i32) {
    %c0_i32 = arith.constant 0 : i32
    %c0_i32_0 = arith.constant 0 : i32
    %c0_i32_1 = arith.constant 0 : i32
    return %c0_i32, %c0_i32_0 : i32, i32
  }
  func.func @transform_2(%arg0: i32) -> (i32, i32) {
    %c0_i32 = arith.constant 0 : i32
    %c0_i32_0 = arith.constant 0 : i32
    %c0_i32_1 = arith.constant 0 : i32
    return %c0_i32, %c0_i32_0 : i32, i32
  }
  func.func @transform_3(%arg0: i32) -> (i32, i32) {
    %c0_i32 = arith.constant 0 : i32
    %c0_i32_0 = arith.constant 0 : i32
    return %arg0, %c0_i32 : i32, i32
  }
}

</mosaic_0001>

<llo_original>
// kernel: linear_qnet_forward.1
$region0: #{linear_qnet_forward.1}
  #allocation0 [shape = 'u32[]', space=smem, size = 0x4, offset = 0x4, fixed_abs, tag = 'smem constant byte address 0x4 - core index']
  #allocation1 [shape = 'u32[144,128]{1,0:T(1,128)}', space=vmem, size = 0x12000, scoped, tag = 'internal scratch']
  %s0 = inlined_call_operand.vmem [shape: bf16[16,128], index: 0, kind: input, shape index: {}]
  %s1 = inlined_call_operand.hbm [shape: bf16[128,128], index: 1, kind: input, shape index: {}]
  %s2 = inlined_call_operand.hbm [shape: bf16[128,128], index: 2, kind: input, shape index: {}]
  %s3 = inlined_call_operand.vmem [shape: bf16[16,128], index: 3, kind: output, shape index: {}]
  %s4 = sld [smem:[#allocation0]]
  $region30: #{linear_qnet_forward.1} parent=0
    _
  %s6 = ssub.s32 1, %s4
  %s7 = scalar_select 0, %s6, %s4
  $region1: #{linear_qnet_forward.1} parent=0
    #allocation2 [shape = 'u8[32768]{0}', space=vmem, size = 0x8000, scoped, tag = 'input window, operand 1, single buffered']
    #allocation3 [shape = 's32[1]{0}', space=sflag, size = 0x4, scoped, tag = 'scoped memory for linear_qnet_forward.1']
    #allocation4 [shape = 'u8[32768]{0}', space=vmem, size = 0x8000, scoped, tag = 'input window, operand 2, single buffered']
    #allocation5 [shape = 's32[1]{0}', space=sflag, size = 0x4, scoped, tag = 'scoped memory for linear_qnet_forward.1']
    %8 = vsyncpa [#allocation3], 0
    %9 = vsyncpa [#allocation5], 0
    // Predicated region
    $region2: #{linear_qnet_forward.1} parent=1 // pred_check
      _
    $region3: #{linear_qnet_forward.1} parent=1 // pred_check_branch
      %11 = sbr.rel (0) target = $region5
    $region4: #{linear_qnet_forward.1} parent=1 // pred_region
      _
    $region5: #{linear_qnet_forward.1} parent=1 // pred_fallthru
      _
    // Predicated region
    $region6: #{linear_qnet_forward.1} parent=1 // pred_check
      _
    $region7: #{linear_qnet_forward.1} parent=1 // pred_check_branch
      %13 = sbr.rel (0) target = $region9
    $region8: #{linear_qnet_forward.1} parent=1 // pred_region
      %s15 = ssub.s32 1024, 1024
      %16 = vsyncadd [#allocation3], %s15
      %s17 = sshll.u32 [#allocation2], 4
      %s18 = int_to_ptr.vmem [resolvable:$true] %s17
      %23 = dma.hbm_to_vmem [thread:$0]  %s1, 1024, %s18, [#allocation3], 64, 64, 4
    $region9: #{linear_qnet_forward.1} parent=1 // pred_fallthru
      _
    // Predicated region
    $region10: #{linear_qnet_forward.1} parent=1 // pred_check
      _
    $region11: #{linear_qnet_forward.1} parent=1 // pred_check_branch
      %25 = sbr.rel (0) target = $region13
    $region12: #{linear_qnet_forward.1} parent=1 // pred_region
      %s27 = ssub.s32 1024, 1024
      %28 = vsyncadd [#allocation5], %s27
      %s29 = sshll.u32 [#allocation4], 4
      %s30 = int_to_ptr.vmem [resolvable:$true] %s29
      %35 = dma.hbm_to_vmem [thread:$0]  %s2, 1024, %s30, [#allocation5], 64, 64, 4
    $region13: #{linear_qnet_forward.1} parent=1 // pred_fallthru
      _
    // Predicated region
    $region14: #{linear_qnet_forward.1} parent=1 // pred_check
      _
    $region15: #{linear_qnet_forward.1} parent=1 // pred_check_branch
      %37 = sbr.rel (0) target = $region17
    $region16: #{linear_qnet_forward.1} parent=1 // pred_region
      %38 = dma.done [#allocation3], 1024
    $region17: #{linear_qnet_forward.1} parent=1 // pred_fallthru
      _
    // Predicated region
    $region18: #{linear_qnet_forward.1} parent=1 // pred_check
      _
    $region19: #{linear_qnet_forward.1} parent=1 // pred_check_branch
      %40 = sbr.rel (0) target = $region21
    $region20: #{linear_qnet_forward.1} parent=1 // pred_region
      %41 = dma.done [#allocation5], 1024
    $region21: #{linear_qnet_forward.1} parent=1 // pred_fallthru
      _
    %v43 = vld [vmem:[%s0] sm:$0xf]
    %v44 = vld [vmem:[%s0 + $0x4] sm:$0xf]
    %v45 = vld [vmem:[#allocation2] sm:$0xf]
    %v46 = vld [vmem:[#allocation2 + $0x4] sm:$0xf]
    %v47 = vld [vmem:[#allocation2 + $0x8] sm:$0xf]
    %v48 = vld [vmem:[#allocation2 + $0xc] sm:$0xf]
    %v49 = vld [vmem:[#allocation2 + $0x10] sm:$0xf]
    %v50 = vld [vmem:[#allocation2 + $0x14] sm:$0xf]
    %v51 = vld [vmem:[#allocation2 + $0x18] sm:$0xf]
    %v52 = vld [vmem:[#allocation2 + $0x1c] sm:$0xf]
    %v53 = vld [vmem:[#allocation2 + $0x20] sm:$0xf]
    %v54 = vld [vmem:[#allocation2 + $0x24] sm:$0xf]
    %v55 = vld [vmem:[#allocation2 + $0x28] sm:$0xf]
    %v56 = vld [vmem:[#allocation2 + $0x2c] sm:$0xf]
    %v57 = vld [vmem:[#allocation2 + $0x30] sm:$0xf]
    %v58 = vld [vmem:[#allocation2 + $0x34] sm:$0xf]
    %v59 = vld [vmem:[#allocation2 + $0x38] sm:$0xf]
    %v60 = vld [vmem:[#allocation2 + $0x3c] sm:$0xf]
    %v63 = vunpack.c.l.b16 %v43
    %v64 = vunpack.c.l.b16 %v44
    %v65 = vpack.c.b16 %v64, %v63
    %v83 = vunpack.c.l.b16 %v45
    %v84 = vunpack.c.l.b16 %v46
    %v85 = vunpack.c.l.b16 %v47
    %v86 = vunpack.c.l.b16 %v48
    %v87 = vunpack.c.l.b16 %v49
    %v88 = vunpack.c.l.b16 %v50
    %v89 = vunpack.c.l.b16 %v51
    %v90 = vunpack.c.l.b16 %v52
    %v91 = vunpack.c.l.b16 %v53
    %v92 = vunpack.c.l.b16 %v54
    %v93 = vunpack.c.l.b16 %v55
    %v94 = vunpack.c.l.b16 %v56
    %v95 = vunpack.c.l.b16 %v57
    %v96 = vunpack.c.l.b16 %v58
    %v97 = vunpack.c.l.b16 %v59
    %v98 = vunpack.c.l.b16 %v60
    %v99 = vpack.c.b16 %v84, %v83
    %v100 = vpack.c.b16 %v86, %v85
    %v101 = vpack.c.b16 %v88, %v87
    %v102 = vpack.c.b16 %v90, %v89
    %v103 = vpack.c.b16 %v92, %v91
    %v104 = vpack.c.b16 %v94, %v93
    %v105 = vpack.c.b16 %v96, %v95
    %v106 = vpack.c.b16 %v98, %v97
    %115 = vmatprep.subr.bf16.mxu0 0
    %116 = vmatpush1.bf16.msra.mxu0 %v99
    %117 = vmatprep.subr.bf16.mxu0 0
    %118 = vmatpush1.bf16.msra.mxu0 %v100
    %119 = vmatprep.subr.bf16.mxu0 0
    %120 = vmatpush1.bf16.msra.mxu0 %v101
    %121 = vmatprep.subr.bf16.mxu0 0
    %122 = vmatpush1.bf16.msra.mxu0 %v102
    %123 = vmatprep.subr.bf16.mxu0 0
    %124 = vmatpush1.bf16.msra.mxu0 %v103
    %125 = vmatprep.subr.bf16.mxu0 0
    %126 = vmatpush1.bf16.msra.mxu0 %v104
    %127 = vmatprep.subr.bf16.mxu0 0
    %128 = vmatpush1.bf16.msra.mxu0 %v105
    %129 = vmatprep.subr.bf16.mxu0 0
    %130 = vmatpush1.bf16.msra.mxu0 %v106
    %131 = vmatprep.subr.bf16.mxu0 0
    %132 = vmatpush1.bf16.msra.mxu0 0
    %133 = vmatprep.subr.bf16.mxu0 0
    %134 = vmatpush1.bf16.msra.mxu0 0
    %135 = vmatprep.subr.bf16.mxu0 0
    %136 = vmatpush1.bf16.msra.mxu0 0
    %137 = vmatprep.subr.bf16.mxu0 0
    %138 = vmatpush1.bf16.msra.mxu0 0
    %139 = vmatprep.subr.bf16.mxu0 0
    %140 = vmatpush1.bf16.msra.mxu0 0
    %141 = vmatprep.subr.bf16.mxu0 0
    %142 = vmatpush1.bf16.msra.mxu0 0
    %143 = vmatprep.subr.bf16.mxu0 0
    %144 = vmatpush1.bf16.msra.mxu0 0
    %145 = vmatprep.subr.bf16.mxu0 0
    %146 = vmatpush1.bf16.msra.mxu0 0
    %147 = vmatprep.mubr.bf16.mxu0 0
    %148 = vmatmul.mubr.bf16.gmra.mrb[0].mxu0 %v65
    %v149 = vpop.f32.mrb[0].mxu0
    %v150 = vadd.f32 0.0, %v149
    %v151 = vpop.f32.mrb[0].mxu0
    %v152 = vpop.f32.mrb[0].mxu0
    %v153 = vadd.f32 0.0, %v152
    %v154 = vpop.f32.mrb[0].mxu0
    %155 = vdwg.mxu0
    %v156 = vmax.f32 %v150, 0.0
    %v157 = vmax.f32 %v153, 0.0
    %v158 = vpack.c.bf16 %v157, %v156
    %v159 = vld [vmem:[#allocation4] sm:$0xf]
    %v160 = vld [vmem:[#allocation4 + $0x4] sm:$0xf]
    %v161 = vld [vmem:[#allocation4 + $0x8] sm:$0xf]
    %v162 = vld [vmem:[#allocation4 + $0xc] sm:$0xf]
    %v163 = vld [vmem:[#allocation4 + $0x10] sm:$0xf]
    %v164 = vld [vmem:[#allocation4 + $0x14] sm:$0xf]
    %v165 = vld [vmem:[#allocation4 + $0x18] sm:$0xf]
    %v166 = vld [vmem:[#allocation4 + $0x1c] sm:$0xf]
    %v167 = vld [vmem:[#allocation4 + $0x20] sm:$0xf]
    %v168 = vld [vmem:[#allocation4 + $0x24] sm:$0xf]
    %v169 = vld [vmem:[#allocation4 + $0x28] sm:$0xf]
    %v170 = vld [vmem:[#allocation4 + $0x2c] sm:$0xf]
    %v171 = vld [vmem:[#allocation4 + $0x30] sm:$0xf]
    %v172 = vld [vmem:[#allocation4 + $0x34] sm:$0xf]
    %v173 = vld [vmem:[#allocation4 + $0x38] sm:$0xf]
    %v174 = vld [vmem:[#allocation4 + $0x3c] sm:$0xf]
    %v191 = vunpack.c.l.b16 %v159
    %v192 = vunpack.c.l.b16 %v160
    %v193 = vunpack.c.l.b16 %v161
    %v194 = vunpack.c.l.b16 %v162
    %v195 = vunpack.c.l.b16 %v163
    %v196 = vunpack.c.l.b16 %v164
    %v197 = vunpack.c.l.b16 %v165
    %v198 = vunpack.c.l.b16 %v166
    %v199 = vunpack.c.l.b16 %v167
    %v200 = vunpack.c.l.b16 %v168
    %v201 = vunpack.c.l.b16 %v169
    %v202 = vunpack.c.l.b16 %v170
    %v203 = vunpack.c.l.b16 %v171
    %v204 = vunpack.c.l.b16 %v172
    %v205 = vunpack.c.l.b16 %v173
    %v206 = vunpack.c.l.b16 %v174
    %v207 = vpack.c.b16 %v192, %v191
    %v208 = vpack.c.b16 %v194, %v193
    %v209 = vpack.c.b16 %v196, %v195
    %v210 = vpack.c.b16 %v198, %v197
    %v211 = vpack.c.b16 %v200, %v199
    %v212 = vpack.c.b16 %v202, %v201
    %v213 = vpack.c.b16 %v204, %v203
    %v214 = vpack.c.b16 %v206, %v205
    %223 = vmatprep.subr.bf16.mxu0 0
    %224 = vmatpush1.bf16.msra.mxu0 %v207
    %225 = vmatprep.subr.bf16.mxu0 0
    %226 = vmatpush1.bf16.msra.mxu0 %v208
    %227 = vmatprep.subr.bf16.mxu0 0
    %228 = vmatpush1.bf16.msra.mxu0 %v209
    %229 = vmatprep.subr.bf16.mxu0 0
    %230 = vmatpush1.bf16.msra.mxu0 %v210
    %231 = vmatprep.subr.bf16.mxu0 0
    %232 = vmatpush1.bf16.msra.mxu0 %v211
    %233 = vmatprep.subr.bf16.mxu0 0
    %234 = vmatpush1.bf16.msra.mxu0 %v212
    %235 = vmatprep.subr.bf16.mxu0 0
    %236 = vmatpush1.bf16.msra.mxu0 %v213
    %237 = vmatprep.subr.bf16.mxu0 0
    %238 = vmatpush1.bf16.msra.mxu0 %v214
    %239 = vmatprep.subr.bf16.mxu0 0
    %240 = vmatpush1.bf16.msra.mxu0 0
    %241 = vmatprep.subr.bf16.mxu0 0
    %242 = vmatpush1.bf16.msra.mxu0 0
    %243 = vmatprep.subr.bf16.mxu0 0
    %244 = vmatpush1.bf16.msra.mxu0 0
    %245 = vmatprep.subr.bf16.mxu0 0
    %246 = vmatpush1.bf16.msra.mxu0 0
    %247 = vmatprep.subr.bf16.mxu0 0
    %248 = vmatpush1.bf16.msra.mxu0 0
    %249 = vmatprep.subr.bf16.mxu0 0
    %250 = vmatpush1.bf16.msra.mxu0 0
    %251 = vmatprep.subr.bf16.mxu0 0
    %252 = vmatpush1.bf16.msra.mxu0 0
    %253 = vmatprep.subr.bf16.mxu0 0
    %254 = vmatpush1.bf16.msra.mxu0 0
    %255 = vmatprep.mubr.bf16.mxu0 0
    %256 = vmatmul.mubr.bf16.gmra.mrb[0].mxu0 %v158
    %v257 = vpop.f32.mrb[0].mxu0
    %v258 = vadd.f32 0.0, %v257
    %v259 = vpop.f32.mrb[0].mxu0
    %v260 = vpop.f32.mrb[0].mxu0
    %v261 = vadd.f32 0.0, %v260
    %v262 = vpop.f32.mrb[0].mxu0
    %263 = vdwg.mxu0
    %v264 = vpack.c.bf16 %v261, %v258
    %v266 = vunpack.c.l.b16 %v264
    %v267 = vunpack.c.h.b16 %v264
    %v268 = vpack.c.b16 %v266, %v266
    %v269 = vpack.c.b16 %v267, %v267
    %272 = vst [vmem:[%s3] sm:$0xf] %v268
    %273 = vst [vmem:[%s3 + $0x4] sm:$0xf] %v269
    // Predicated region
    $region22: #{linear_qnet_forward.1} parent=1 // pred_check
      _
    $region23: #{linear_qnet_forward.1} parent=1 // pred_check_branch
      %275 = sbr.rel (0) target = $region25
    $region24: #{linear_qnet_forward.1} parent=1 // pred_region
      _
    $region25: #{linear_qnet_forward.1} parent=1 // pred_fallthru
      _
    // Predicated region
    $region26: #{linear_qnet_forward.1} parent=1 // pred_check
      _
    $region27: #{linear_qnet_forward.1} parent=1 // pred_check_branch
      %277 = sbr.rel (0) target = $region29
    $region28: #{linear_qnet_forward.1} parent=1 // pred_region
      _
    $region29: #{linear_qnet_forward.1} parent=1 // pred_fallthru
      _
    %278 = vsyncpa [#allocation3], 1
    %279 = vsyncpa [#allocation5], 1

</llo_original>
